<compile_context>
chip_gen: v5e
topology: v5e:2x2
jax: 0.10.0
libtpu: 0.0.40
codegen_flags: <defaults>
</compile_context>

<pallas_src>
import jax
import jax.numpy as jnp
from jax import lax
from jax.experimental import pallas as pl
from jax.experimental.pallas import tpu as pltpu


def _round_up(a, m):
    return -(-a // m) * m


def mlp_kernel(x_ref, w1_ref, b1_ref, w2_ref, b2_ref, o_ref):
    # fc1 on the MXU: (tb, D) f32 @ (D, Hp) f32 -> (tb, Hp) f32.
    h = jnp.dot(x_ref[...], w1_ref[...], preferred_element_type=jnp.float32)
    h = jnp.maximum(h + b1_ref[...], 0.0)                        # bias + ReLU

    # fc2 has a single output feature: contract h's lane axis against the w2
    # row.  Padded hidden columns are zero in both h and w2, so they add
    # nothing.  Result lands directly in lane-dense (1, tb) layout.
    y = lax.dot_general(w2_ref[...], h, (((1,), (1,)), ((), ())),
                        preferred_element_type=jnp.float32)      # (1, tb)
    y = jnp.maximum(y + b2_ref[0, 0], 0.0)                       # bias + ReLU

    # sigmoid = 1 / (1 + exp(-y)); y >= 0 after ReLU so exp(-y) in (0, 1].
    # exp + reciprocal both run on the otherwise-idle EUP slot.
    s = pl.reciprocal(1.0 + jnp.exp(-y), approx=False)           # (1, tb)
    o_ref[...] = s.reshape(o_ref.shape)                          # (1, 1, tb)


def prepare_params(w1, b1, w2, b2):
    """One-time weight prep (hoisted out of the per-call hot path).

    w1: [D, H]  fc1 weight, pre-transposed to [in, out]  (H = hidden_dim // 2)
    b1: [H]     fc1 bias
    w2: [H, 1]  fc2 weight, pre-transposed to [in, out]
    b2: [1]     fc2 bias
    """
    D, H = w1.shape
    Hp = max(128, _round_up(H, 128))                 # full lane width
    w1p = jnp.pad(w1.astype(jnp.float32), ((0, 0), (0, Hp - H)))          # (D, Hp)
    b1p = jnp.pad(b1.astype(jnp.float32).reshape(1, H), ((0, 0), (0, Hp - H)))
    w2p = jnp.pad(w2.astype(jnp.float32).reshape(H), (0, Hp - H)).reshape(1, Hp)
    b2p = jnp.asarray(b2, jnp.float32).reshape(1, 1)                      # SMEM scalar
    return w1p, b1p, w2p, b2p


def movie_review_nn(x, params, *, n_steps=None, vmem_budget_bytes=8 << 20):
    """Forward pass of MovieReviewNN.  x: [B, D] f32, returns [B, 1] f32."""
    w1p, b1p, w2p, b2p = params
    B, D = x.shape
    Hp = w1p.shape[1]

    # ---- batch tile sized from a target step count ---------------------------
    # >= 2 equal "parallel" steps lets v7x shard the batch over both
    # TensorCores; on v5e/v6e extra steps are pure serial overhead, so the
    # tile is as large as B (and the VMEM budget) allows.  Partial last tiles
    # are padded automatically by Pallas; padded output rows are sliced off.
    if n_steps is None:
        n_steps = 2 if B >= 16 else 1
    tb_cap = max(8, (vmem_budget_bytes // (2 * D * 4)) // 8 * 8)   # dbl-buffered f32
    tb = min(tb_cap, _round_up(pl.cdiv(B, n_steps), 8))
    grid = (pl.cdiv(B, tb),)

    out = pl.pallas_call(
        mlp_kernel,
        # Lane-dense output: one (1, tb) row per grid step, unmasked stores.
        out_shape=jax.ShapeDtypeStruct((grid[0], 1, tb), jnp.float32),
        grid=grid,
        in_specs=[
            pl.BlockSpec((tb, D), lambda i: (i, 0)),    # x tile (f32, only moving input)
            pl.BlockSpec((D, Hp), lambda i: (0, 0)),    # W1 (resident)
            pl.BlockSpec((1, Hp), lambda i: (0, 0)),    # b1
            pl.BlockSpec((1, Hp), lambda i: (0, 0)),    # W2 as a row
            pl.BlockSpec(memory_space=pltpu.MemorySpace.SMEM),   # b2 scalar
        ],
        out_specs=pl.BlockSpec((1, 1, tb), lambda i: (i, 0, 0)),
        compiler_params=pltpu.CompilerParams(
            dimension_semantics=("parallel",)),
    )(x.astype(jnp.float32), w1p, b1p, w2p, b2p)

    return out.reshape(grid[0] * tb, 1)[:B]


def reference(x, w1, b1, w2, b2):
    h = jnp.maximum(x @ w1 + b1, 0.0)
    y = jnp.maximum(h @ w2 + b2, 0.0)
    return jax.nn.sigmoid(y)


if __name__ == "__main__":
    # Shapes consistent with the module: input_dim=128, hidden_dim=128
    # (so fc1 out = hidden_dim // 2 = 64).  Batch 256 -> two parallel grid
    # steps of 128 rows each (no batch padding needed).
    B, INPUT_DIM, HIDDEN_DIM = 256, 128, 128
    H = HIDDEN_DIM // 2

    key = jax.random.PRNGKey(0)
    kx, k1, k2, k3, k4 = jax.random.split(key, 5)

    # Deterministic init (mimics PyTorch Linear's U(-1/sqrt(fan_in), ...)).
    bound1 = 1.0 / jnp.sqrt(INPUT_DIM)
    bound2 = 1.0 / jnp.sqrt(H)
    w1 = jax.random.uniform(k1, (INPUT_DIM, H), jnp.float32, -bound1, bound1)
    b1 = jax.random.uniform(k2, (H,), jnp.float32, -bound1, bound1)
    w2 = jax.random.uniform(k3, (H, 1), jnp.float32, -bound2, bound2)
    b2 = jax.random.uniform(k4, (1,), jnp.float32, -bound2, bound2)

    x = jax.random.normal(kx, (B, INPUT_DIM), jnp.float32)

    params = prepare_params(w1, b1, w2, b2)           # one-time weight prep
    out = jax.block_until_ready(movie_review_nn(x, params))
    ref = reference(x, w1, b1.reshape(1, H), w2, b2.reshape(1, 1))

    assert out.shape == (B, 1)
    # Kernel is full f32 with an exact reciprocal -> tight tolerance.
    err = float(jnp.max(jnp.abs(out - ref)))
    assert jnp.allclose(out, ref, atol=1e-4, rtol=0.0), f"max abs err {err}"

    print("KERNEL_OK")
</pallas_src>

<mosaic_0001>
module attributes {stable_mosaic.version = 11 : i64} {
  func.func @mlp_kernel(%arg0: i32, %arg1: memref<128x128xf32, #tpu.memory_space<vmem>>, %arg2: memref<128x128xf32, #tpu.memory_space<vmem>>, %arg3: memref<1x128xf32, #tpu.memory_space<vmem>>, %arg4: memref<1x128xf32, #tpu.memory_space<vmem>>, %arg5: memref<1x1xf32, #tpu.memory_space<smem>>, %arg6: memref<1x1x128xf32, #tpu.memory_space<vmem>>) attributes {dimension_semantics = [#tpu.dimension_semantics<parallel>], iteration_bounds = array<i64: 2>, scalar_prefetch = 0 : i64, scratch_operands = 0 : i64, tpu.core_type = #tpu.core_type<tc>, window_params = [{transform_indices = @transform_0, window_bounds = array<i64: 128, 128>}, {pipeline_mode = #tpu.pipeline_mode<synchronous>, transform_indices = @transform_1, window_bounds = array<i64: 128, 128>}, {pipeline_mode = #tpu.pipeline_mode<synchronous>, transform_indices = @transform_2, window_bounds = array<i64: 1, 128>}, {pipeline_mode = #tpu.pipeline_mode<synchronous>, transform_indices = @transform_3, window_bounds = array<i64: 1, 128>}, {transform_indices = @transform_4, window_bounds = array<i64: 1, 1>}, {transform_indices = @transform_5, window_bounds = array<i64: 1, 1, 128>}]} {
    %c0 = arith.constant 0 : index
    %c0_0 = arith.constant 0 : index
    %0 = vector.load %arg1[%c0, %c0_0] : memref<128x128xf32, #tpu.memory_space<vmem>>, vector<128x128xf32>
    %c0_1 = arith.constant 0 : index
    %c0_2 = arith.constant 0 : index
    %1 = vector.load %arg2[%c0_1, %c0_2] : memref<128x128xf32, #tpu.memory_space<vmem>>, vector<128x128xf32>
    %cst = arith.constant dense<0.000000e+00> : vector<128x128xf32>
    %2 = tpu.matmul %0, %1, %cst {dimension_numbers = #tpu.dot_dimension_numbers<[1], [0], [0], [1], [0, 0, 1, 1], [], []>} : vector<128x128xf32>, vector<128x128xf32>, vector<128x128xf32> -> vector<128x128xf32>
    %c0_3 = arith.constant 0 : index
    %c0_4 = arith.constant 0 : index
    %3 = vector.load %arg3[%c0_3, %c0_4] : memref<1x128xf32, #tpu.memory_space<vmem>>, vector<1x128xf32>
    %4 = vector.broadcast %3 : vector<1x128xf32> to vector<128x128xf32>
    %5 = arith.addf %2, %4 : vector<128x128xf32>
    %cst_5 = arith.constant 0.000000e+00 : f32
    %6 = vector.broadcast %cst_5 : f32 to vector<128x128xf32>
    %7 = arith.maximumf %5, %6 : vector<128x128xf32>
    %c0_6 = arith.constant 0 : index
    %c0_7 = arith.constant 0 : index
    %8 = vector.load %arg4[%c0_6, %c0_7] : memref<1x128xf32, #tpu.memory_space<vmem>>, vector<1x128xf32>
    %cst_8 = arith.constant dense<0.000000e+00> : vector<1x128xf32>
    %9 = tpu.matmul %8, %7, %cst_8 {dimension_numbers = #tpu.dot_dimension_numbers<[1], [1], [0], [0], [0, 0, 1, 0], [], []>} : vector<1x128xf32>, vector<128x128xf32>, vector<1x128xf32> -> vector<1x128xf32>
    %c0_9 = arith.constant 0 : index
    %c0_10 = arith.constant 0 : index
    %10 = memref.load %arg5[%c0_9, %c0_10] : memref<1x1xf32, #tpu.memory_space<smem>>
    %11 = vector.broadcast %10 : f32 to vector<1x128xf32>
    %12 = arith.addf %9, %11 : vector<1x128xf32>
    %cst_11 = arith.constant 0.000000e+00 : f32
    %13 = vector.broadcast %cst_11 : f32 to vector<1x128xf32>
    %14 = arith.maximumf %12, %13 : vector<1x128xf32>
    %cst_12 = arith.constant 0.000000e+00 : f32
    %15 = vector.broadcast %cst_12 : f32 to vector<1x128xf32>
    %16 = arith.subf %15, %14 : vector<1x128xf32>
    %17 = math.exp %16 : vector<1x128xf32>
    %cst_13 = arith.constant 1.000000e+00 : f32
    %18 = vector.broadcast %cst_13 : f32 to vector<1x128xf32>
    %19 = arith.addf %18, %17 : vector<1x128xf32>
    %20 = tpu.reciprocal %19 : vector<1x128xf32> -> vector<1x128xf32>
    %21 = vector.shape_cast %20 : vector<1x128xf32> to vector<1x1x128xf32>
    %c0_14 = arith.constant 0 : index
    %c0_15 = arith.constant 0 : index
    %c0_16 = arith.constant 0 : index
    %22 = vector.load %arg6[%c0_14, %c0_15, %c0_16] : memref<1x1x128xf32, #tpu.memory_space<vmem>>, vector<1x1x128xf32>
    tpu.vector_store %arg6[%c0_14, %c0_15, %c0_16], %21 {strides = array<i32>} : memref<1x1x128xf32, #tpu.memory_space<vmem>>, vector<1x1x128xf32>,
    return
  }
  func.func @transform_0(%arg0: i32) -> (i32, i32) {
    %c0_i32 = arith.constant 0 : i32
    %c0_i32_0 = arith.constant 0 : i32
    return %arg0, %c0_i32 : i32, i32
  }
  func.func @transform_1(%arg0: i32) -> (i32, i32) {
    %c0_i32 = arith.constant 0 : i32
    %c0_i32_0 = arith.constant 0 : i32
    %c0_i32_1 = arith.constant 0 : i32
    return %c0_i32, %c0_i32_0 : i32, i32
  }
  func.func @transform_2(%arg0: i32) -> (i32, i32) {
    %c0_i32 = arith.constant 0 : i32
    %c0_i32_0 = arith.constant 0 : i32
    %c0_i32_1 = arith.constant 0 : i32
    return %c0_i32, %c0_i32_0 : i32, i32
  }
  func.func @transform_3(%arg0: i32) -> (i32, i32) {
    %c0_i32 = arith.constant 0 : i32
    %c0_i32_0 = arith.constant 0 : i32
    %c0_i32_1 = arith.constant 0 : i32
    return %c0_i32, %c0_i32_0 : i32, i32
  }
  func.func @transform_4(%arg0: i32) -> (i32, i32) {
    %c0_i32 = arith.constant 0 : i32
    %c0_i32_0 = arith.constant 0 : i32
    %c0_i32_1 = arith.constant 0 : i32
    return %c0_i32, %c0_i32_0 : i32, i32
  }
  func.func @transform_5(%arg0: i32) -> (i32, i32, i32) {
    %c0_i32 = arith.constant 0 : i32
    %c0_i32_0 = arith.constant 0 : i32
    %c0_i32_1 = arith.constant 0 : i32
    return %arg0, %c0_i32, %c0_i32_0 : i32, i32, i32
  }
}

</mosaic_0001>

<llo_original>
// kernel: tpu_custom_call.1
$region0: #{tpu_custom_call.1}
  #allocation0 [shape = 'u32[]', space=smem, size = 0x4, offset = 0x4, fixed_abs, tag = 'smem constant byte address 0x4 - core index']
  #allocation1 [shape = 'u32[72,128]{1,0:T(1,128)}', space=vmem, size = 0x9000, scoped, tag = 'internal scratch']
  #allocation2 [shape = 'f32[1,1]{1,0:T(1,128)S(6)}', space=smem, size = 0x200, scoped, tag = 'scoped memory for tpu_custom_call.1']
  %s0 = inlined_call_operand.hbm [shape: f32[256,128], index: 0, kind: input, shape index: {}]
  %s1 = inlined_call_operand.hbm [shape: f32[128,128], index: 1, kind: input, shape index: {}]
  %s2 = inlined_call_operand.vmem [shape: f32[1,128], index: 2, kind: input, shape index: {}]
  %s3 = inlined_call_operand.vmem [shape: f32[1,128], index: 3, kind: input, shape index: {}]
  %s4 = inlined_call_operand.<no memory space> [shape: f32[1,1], index: 4, kind: input, shape index: {}]
  %s5 = inlined_call_operand.hbm [shape: f32[2,1,128], index: 5, kind: output, shape index: {}]
  %s6 = sld [smem:[#allocation0]]
  $region61: #{tpu_custom_call.1} parent=0
    _
  %s8 = ssub.s32 1, %s6
  %s9 = scalar_select 0, %s8, %s6
  %10 = sst [smem:[#allocation2]] %s4
  $region1: #{tpu_custom_call.1} parent=0
    #allocation3 [shape = 'u8[131072]{0}', space=vmem, size = 0x20000, scoped, tag = 'input window, operand 0']
    #allocation4 [shape = 's32[2]{0}', space=sflag, size = 0x8, scoped, tag = 'scoped memory for tpu_custom_call.1']
    #allocation5 [shape = 's32[2]{0}', space=sflag, size = 0x8, scoped, tag = 'scoped memory for tpu_custom_call.1']
    #allocation6 [shape = 'u8[65536]{0}', space=vmem, size = 0x10000, scoped, tag = 'input window, operand 1, single buffered']
    #allocation7 [shape = 's32[1]{0}', space=sflag, size = 0x4, scoped, tag = 'scoped memory for tpu_custom_call.1']
    #allocation8 [shape = 'u8[1024]{0}', space=vmem, size = 0x400, scoped, tag = 'output window, operand 0']
    %11 = vsyncpa [#allocation4], 0
    %s12 = scalar_lea.sflag [#allocation4], 1
    %13 = vsyncpa %s12, 0
    %14 = vsyncpa [#allocation7], 0
    %15 = vsyncpa [#allocation5], 0
    %s16 = scalar_lea.sflag [#allocation5], 1
    %17 = vsyncpa %s16, 0
    loop: start=0, step=1, limit=4
    $region2: #{tpu_custom_call.1} parent=1 // loop_pre_header
      _
    $region3: #{tpu_custom_call.1} parent=1 // loop_header
      %s19 = sphi 0, %s23
      %p20 = scmp.ge.s32.totalorder %s19, 4
      %s29 = sphi 0, %s31
      %s32 = sphi 0, %s29
      %s33 = sphi 0, %s32
      %s49 = sphi 0, %s33
      %s53 = sphi 0, %s53
      %s55 = sphi 0, %s53
      %s56 = sphi 0, %s55
      %s70 = sphi 0, %s56
      %s74 = sphi 0, %s74
      %s76 = sphi 0, %s74
      %s77 = sphi 0, %s76
      %s91 = sphi 0, %s77
      %s95 = sphi 0, %s95
      %s97 = sphi 0, %s95
      %s98 = sphi 0, %s97
      %s112 = sphi 0, %s98
      %s116 = sphi 0, %s116
      %s118 = sphi 0, %s116
      %s119 = sphi 0, %s118
      %s133 = sphi 0, %s119
      %s139 = sphi 0, %s141
      %s142 = sphi 0, %s139
      %s143 = sphi 0, %s142
      %s159 = sphi 0, %s143
    $region4: #{tpu_custom_call.1} parent=1 // loop_header_branch
      %22 = sbr.rel (%p20) target = $region8
    $region5: #{tpu_custom_call.1} parent=1 // loop_body
      %s24 = ssub.s32 %s19, 1
      %s25 = ssub.s32 %s19, 2
      %s26 = sadd.s32 %s19, 1
      %s27 = ssub.s32 %s19, %s26
      %p28 = scmp.eq.s32.totalorder %s27, 0
      %s30 = sadd.s32 %s29, 1
      %s31 = scalar_select %p28, %s29, %s30
      %p34 = pneg %p28
      %p35 = scmp.eq.s32.totalorder %s19, 1
      %p36 = por %p34, %p35
      %p37 = scmp.ne.s32.totalorder %s29, %s32
      %p38 = scmp.eq.s32.totalorder %s19, 0
      %p39 = por %p37, %p38
      %p40 = scmp.ne.s32.totalorder %s29, %s32
      %p41 = scmp.eq.s32.totalorder %s24, 1
      %p42 = por %p40, %p41
      %p43 = scmp.ne.s32.totalorder %s32, %s33
      %p44 = scmp.eq.s32.totalorder %s24, 0
      %p45 = por %p43, %p44
      %p46 = scmp.ne.s32.totalorder %s32, %s33
      %p47 = scmp.eq.s32.totalorder %s25, 1
      %p48 = por %p46, %p47
      %p50 = scmp.ne.s32.totalorder %s33, %s49
      %p51 = scmp.eq.s32.totalorder %s25, 0
      %p52 = por %p50, %p51
      %s54 = sadd.s32 %s53, 1
      %p57 = scmp.eq.s32.totalorder %s19, 1
      %p58 = scmp.ne.s32.totalorder %s53, %s55
      %p59 = scmp.eq.s32.totalorder %s19, 0
      %p60 = por %p58, %p59
      %p61 = scmp.ne.s32.totalorder %s53, %s55
      %p62 = scmp.eq.s32.totalorder %s24, 1
      %p63 = por %p61, %p62
      %p64 = scmp.ne.s32.totalorder %s55, %s56
      %p65 = scmp.eq.s32.totalorder %s24, 0
      %p66 = por %p64, %p65
      %p67 = scmp.ne.s32.totalorder %s55, %s56
      %p68 = scmp.eq.s32.totalorder %s25, 1
      %p69 = por %p67, %p68
      %p71 = scmp.ne.s32.totalorder %s56, %s70
      %p72 = scmp.eq.s32.totalorder %s25, 0
      %p73 = por %p71, %p72
      %s75 = sadd.s32 %s74, 1
      %p78 = scmp.eq.s32.totalorder %s19, 1
      %p79 = scmp.ne.s32.totalorder %s74, %s76
      %p80 = scmp.eq.s32.totalorder %s19, 0
      %p81 = por %p79, %p80
      %p82 = scmp.ne.s32.totalorder %s74, %s76
      %p83 = scmp.eq.s32.totalorder %s24, 1
      %p84 = por %p82, %p83
      %p85 = scmp.ne.s32.totalorder %s76, %s77
      %p86 = scmp.eq.s32.totalorder %s24, 0
      %p87 = por %p85, %p86
      %p88 = scmp.ne.s32.totalorder %s76, %s77
      %p89 = scmp.eq.s32.totalorder %s25, 1
      %p90 = por %p88, %p89
      %p92 = scmp.ne.s32.totalorder %s77, %s91
      %p93 = scmp.eq.s32.totalorder %s25, 0
      %p94 = por %p92, %p93
      %s96 = sadd.s32 %s95, 1
      %p99 = scmp.eq.s32.totalorder %s19, 1
      %p100 = scmp.ne.s32.totalorder %s95, %s97
      %p101 = scmp.eq.s32.totalorder %s19, 0
      %p102 = por %p100, %p101
      %p103 = scmp.ne.s32.totalorder %s95, %s97
      %p104 = scmp.eq.s32.totalorder %s24, 1
      %p105 = por %p103, %p104
      %p106 = scmp.ne.s32.totalorder %s97, %s98
      %p107 = scmp.eq.s32.totalorder %s24, 0
      %p108 = por %p106, %p107
      %p109 = scmp.ne.s32.totalorder %s97, %s98
      %p110 = scmp.eq.s32.totalorder %s25, 1
      %p111 = por %p109, %p110
      %p113 = scmp.ne.s32.totalorder %s98, %s112
      %p114 = scmp.eq.s32.totalorder %s25, 0
      %p115 = por %p113, %p114
      %s117 = sadd.s32 %s116, 1
      %p120 = scmp.eq.s32.totalorder %s19, 1
      %p121 = scmp.ne.s32.totalorder %s116, %s118
      %p122 = scmp.eq.s32.totalorder %s19, 0
      %p123 = por %p121, %p122
      %p124 = scmp.ne.s32.totalorder %s116, %s118
      %p125 = scmp.eq.s32.totalorder %s24, 1
      %p126 = por %p124, %p125
      %p127 = scmp.ne.s32.totalorder %s118, %s119
      %p128 = scmp.eq.s32.totalorder %s24, 0
      %p129 = por %p127, %p128
      %p130 = scmp.ne.s32.totalorder %s118, %s119
      %p131 = scmp.eq.s32.totalorder %s25, 1
      %p132 = por %p130, %p131
      %p134 = scmp.ne.s32.totalorder %s119, %s133
      %p135 = scmp.eq.s32.totalorder %s25, 0
      %p136 = por %p134, %p135
      %s137 = ssub.s32 %s19, %s26
      %p138 = scmp.eq.s32.totalorder %s137, 0
      %s140 = sadd.s32 %s139, 1
      %s141 = scalar_select %p138, %s139, %s140
      %p144 = pneg %p138
      %p145 = scmp.eq.s32.totalorder %s19, 1
      %p146 = por %p144, %p145
      %p147 = scmp.ne.s32.totalorder %s139, %s142
      %p148 = scmp.eq.s32.totalorder %s19, 0
      %p149 = por %p147, %p148
      %p150 = scmp.ne.s32.totalorder %s139, %s142
      %p151 = scmp.eq.s32.totalorder %s24, 1
      %p152 = por %p150, %p151
      %p153 = scmp.ne.s32.totalorder %s142, %s143
      %p154 = scmp.eq.s32.totalorder %s24, 0
      %p155 = por %p153, %p154
      %p156 = scmp.ne.s32.totalorder %s142, %s143
      %p157 = scmp.eq.s32.totalorder %s25, 1
      %p158 = por %p156, %p157
      %p160 = scmp.ne.s32.totalorder %s143, %s159
      %p161 = scmp.eq.s32.totalorder %s25, 0
      %p162 = por %p160, %p161
      %p163 = scmp.le.s32.totalorder 1, %s19
      %p164 = scmp.lt.s32.totalorder %s19, 3
      %p165 = pnand %p163, %p164
      %p166 = pneg %p165
      // Predicated region
      $region9: #{tpu_custom_call.1} parent=5 // pred_check
        _
      $region10: #{tpu_custom_call.1} parent=5 // pred_check_branch
        %168 = sbr.rel (%p165) target = $region12
      $region11: #{tpu_custom_call.1} parent=5 // pred_region
        %s169 = ssub.s32 %s19, 1
        // Predicated region
        $region13: #{tpu_custom_call.1} parent=11 // pred_check
          %p170 = pneg %p66
        $region14: #{tpu_custom_call.1} parent=11 // pred_check_branch
          %172 = sbr.rel (%p170) target = $region16
        $region15: #{tpu_custom_call.1} parent=11 // pred_region
          %174 = vsyncadd [#allocation7], 0
          %s175 = sshll.u32 %s1, 4
          %s176 = int_to_ptr.hbm [resolvable:$true] %s175
          %s177 = sshll.u32 [#allocation6], 4
          %s178 = int_to_ptr.vmem [resolvable:$true] %s177
          %183 = dma.hbm_to_vmem [thread:$0]  %s176, 2048, %s178, [#allocation7], 128, 128, 8
        $region16: #{tpu_custom_call.1} parent=11 // pred_fallthru
          _
        // Predicated region
        $region17: #{tpu_custom_call.1} parent=11 // pred_check
          %p184 = pneg %p87
        $region18: #{tpu_custom_call.1} parent=11 // pred_check_branch
          %186 = sbr.rel (%p184) target = $region20
        $region19: #{tpu_custom_call.1} parent=11 // pred_region
          _
        $region20: #{tpu_custom_call.1} parent=11 // pred_fallthru
          _
        // Predicated region
        $region21: #{tpu_custom_call.1} parent=11 // pred_check
          %p187 = pneg %p108
        $region22: #{tpu_custom_call.1} parent=11 // pred_check_branch
          %189 = sbr.rel (%p187) target = $region24
        $region23: #{tpu_custom_call.1} parent=11 // pred_region
          _
        $region24: #{tpu_custom_call.1} parent=11 // pred_fallthru
          _
        // Predicated region
        $region25: #{tpu_custom_call.1} parent=11 // pred_check
          %p190 = pneg %p129
        $region26: #{tpu_custom_call.1} parent=11 // pred_check_branch
          %192 = sbr.rel (%p190) target = $region28
        $region27: #{tpu_custom_call.1} parent=11 // pred_region
          _
        $region28: #{tpu_custom_call.1} parent=11 // pred_fallthru
          _
      $region12: #{tpu_custom_call.1} parent=5 // pred_fallthru
        _
      %p193 = scmp.lt.s32.totalorder %s19, 2
      // Predicated region
      $region29: #{tpu_custom_call.1} parent=5 // pred_check
        %p194 = pneg %p193
      $region30: #{tpu_custom_call.1} parent=5 // pred_check_branch
        %196 = sbr.rel (%p194) target = $region32
      $region31: #{tpu_custom_call.1} parent=5 // pred_region
        // Predicated region
        $region33: #{tpu_custom_call.1} parent=31 // pred_check
          %p197 = pneg %p39
        $region34: #{tpu_custom_call.1} parent=31 // pred_check_branch
          %199 = sbr.rel (%p197) target = $region36
        $region35: #{tpu_custom_call.1} parent=31 // pred_region
          %s200 = sand.u32 %s29, 1
          %s201 = scalar_lea.sflag [#allocation4], %s200
          %s202 = sand.u32 %s29, 1
          %s203 = smul.addr %s202, 128
          %s204 = scalar_lea.vmem [#allocation3], %s203
          %s205 = smul.u32 16, %s19
          %207 = vsyncadd %s201, 0
          %s208 = smul.addr %s205, 8
          %s209 = scalar_lea.hbm %s0, %s208
          %s210 = sshll.u32 %s209, 4
          %s211 = int_to_ptr.hbm [resolvable:$true] %s210
          %s212 = sshll.u32 %s204, 4
          %s213 = int_to_ptr.vmem [resolvable:$true] %s212
          %218 = dma.hbm_to_vmem [thread:$0]  %s211, 2048, %s213, %s201, 128, 128, 8
        $region36: #{tpu_custom_call.1} parent=31 // pred_fallthru
          _
      $region32: #{tpu_custom_call.1} parent=5 // pred_fallthru
        _
      %p219 = scmp.le.s32.totalorder 1, %s19
      %p220 = scmp.lt.s32.totalorder %s19, 3
      %p221 = pnand %p219, %p220
      %p222 = pneg %p221
      // Predicated region
      $region37: #{tpu_custom_call.1} parent=5 // pred_check
        _
      $region38: #{tpu_custom_call.1} parent=5 // pred_check_branch
        %224 = sbr.rel (%p221) target = $region40
      $region39: #{tpu_custom_call.1} parent=5 // pred_region
        %s225 = ssub.s32 %s19, 1
        %s226 = sand.u32 %s32, 1
        %s227 = scalar_lea.sflag [#allocation4], %s226
        %s228 = sand.u32 %s32, 1
        %s229 = smul.addr %s228, 128
        %s230 = scalar_lea.vmem [#allocation3], %s229
        // Predicated region
        $region41: #{tpu_custom_call.1} parent=39 // pred_check
          %p231 = pneg %p45
        $region42: #{tpu_custom_call.1} parent=39 // pred_check_branch
          %233 = sbr.rel (%p231) target = $region44
        $region43: #{tpu_custom_call.1} parent=39 // pred_region
          %235 = dma.done %s227, 2048
        $region44: #{tpu_custom_call.1} parent=39 // pred_fallthru
          _
        // Predicated region
        $region45: #{tpu_custom_call.1} parent=39 // pred_check
          %p236 = pneg %p66
        $region46: #{tpu_custom_call.1} parent=39 // pred_check_branch
          %238 = sbr.rel (%p236) target = $region48
        $region47: #{tpu_custom_call.1} parent=39 // pred_region
          %240 = dma.done [#allocation7], 2048
        $region48: #{tpu_custom_call.1} parent=39 // pred_fallthru
          _
        %s241 = sand.u32 %s32, 1
        %s242 = scalar_lea.sflag [#allocation4], %s241
        %s243 = sand.u32 %s32, 1
        %s244 = smul.addr %s243, 128
        %s245 = scalar_lea.vmem [#allocation3], %s244
        %p246 = pneg %p45
        %p247 = pneg %p42
        %p248 = pneg %p66
        %p249 = pneg %p63
        %p250 = pneg %p87
        %p251 = pneg %p84
        %p252 = pneg %p108
        %p253 = pneg %p105
        %p254 = pneg %p129
        %p255 = pneg %p126
        %p256 = pneg %p155
        %p257 = pneg %p152
        %s258 = sand.u32 %s142, 1
        %s259 = scalar_lea.sflag [#allocation5], %s258
        %s260 = sand.u32 %s142, 1
        %s261 = scalar_lea.vmem [#allocation8], %s260
        %s262 = smul.u32 16, %s24
        %v263 = vld [vmem:[%s230] sm:$0xff]
        %v264 = vld [vmem:[%s230 + $0x8] sm:$0xff]
        %v265 = vld [vmem:[%s230 + $0x10] sm:$0xff]
        %v266 = vld [vmem:[%s230 + $0x18] sm:$0xff]
        %v267 = vld [vmem:[%s230 + $0x20] sm:$0xff]
        %v268 = vld [vmem:[%s230 + $0x28] sm:$0xff]
        %v269 = vld [vmem:[%s230 + $0x30] sm:$0xff]
        %v270 = vld [vmem:[%s230 + $0x38] sm:$0xff]
        %v271 = vld [vmem:[%s230 + $0x40] sm:$0xff]
        %v272 = vld [vmem:[%s230 + $0x48] sm:$0xff]
        %v273 = vld [vmem:[%s230 + $0x50] sm:$0xff]
        %v274 = vld [vmem:[%s230 + $0x58] sm:$0xff]
        %v275 = vld [vmem:[%s230 + $0x60] sm:$0xff]
        %v276 = vld [vmem:[%s230 + $0x68] sm:$0xff]
        %v277 = vld [vmem:[%s230 + $0x70] sm:$0xff]
        %v278 = vld [vmem:[%s230 + $0x78] sm:$0xff]
        %v279 = vld [vmem:[#allocation6] sm:$0xff]
        %v280 = vld [vmem:[#allocation6 + $0x8] sm:$0xff]
        %v281 = vld [vmem:[#allocation6 + $0x10] sm:$0xff]
        %v282 = vld [vmem:[#allocation6 + $0x18] sm:$0xff]
        %v283 = vld [vmem:[#allocation6 + $0x20] sm:$0xff]
        %v284 = vld [vmem:[#allocation6 + $0x28] sm:$0xff]
        %v285 = vld [vmem:[#allocation6 + $0x30] sm:$0xff]
        %v286 = vld [vmem:[#allocation6 + $0x38] sm:$0xff]
        %v287 = vld [vmem:[#allocation6 + $0x40] sm:$0xff]
        %v288 = vld [vmem:[#allocation6 + $0x48] sm:$0xff]
        %v289 = vld [vmem:[#allocation6 + $0x50] sm:$0xff]
        %v290 = vld [vmem:[#allocation6 + $0x58] sm:$0xff]
        %v291 = vld [vmem:[#allocation6 + $0x60] sm:$0xff]
        %v292 = vld [vmem:[#allocation6 + $0x68] sm:$0xff]
        %v293 = vld [vmem:[#allocation6 + $0x70] sm:$0xff]
        %v294 = vld [vmem:[#allocation6 + $0x78] sm:$0xff]
        %v295 = vld [vmem:[%s2] sm:$0x1]
        %v297 = vperm.slane %v295, 0
        %299 = vmatpush.msra.mxu0 %v294
        %300 = vmatpush.msra.mxu0 %v293
        %301 = vmatpush.msra.mxu0 %v292
        %302 = vmatpush.msra.mxu0 %v291
        %303 = vmatpush.msra.mxu0 %v290
        %304 = vmatpush.msra.mxu0 %v289
        %305 = vmatpush.msra.mxu0 %v288
        %306 = vmatpush.msra.mxu0 %v287
        %307 = vmatpush.msra.mxu0 %v286
        %308 = vmatpush.msra.mxu0 %v285
        %309 = vmatpush.msra.mxu0 %v284
        %310 = vmatpush.msra.mxu0 %v283
        %311 = vmatpush.msra.mxu0 %v282
        %312 = vmatpush.msra.mxu0 %v281
        %313 = vmatpush.msra.mxu0 %v280
        %314 = vmatpush.msra.mxu0 %v279
        %315 = vmatmul.f32.gmra.mxu0 %v263
        %v316 = vpop.f32.mrf.mxu0
        %v317 = vadd.f32 %v297, %v316
        %318 = vmatmul.f32.gmra.mxu0 %v264
        %v319 = vpop.f32.mrf.mxu0
        %v320 = vadd.f32 %v297, %v319
        %321 = vmatmul.f32.gmra.mxu0 %v265
        %v322 = vpop.f32.mrf.mxu0
        %v323 = vadd.f32 %v297, %v322
        %324 = vmatmul.f32.gmra.mxu0 %v266
        %v325 = vpop.f32.mrf.mxu0
        %v326 = vadd.f32 %v297, %v325
        %327 = vmatmul.f32.gmra.mxu0 %v267
        %v328 = vpop.f32.mrf.mxu0
        %v329 = vadd.f32 %v297, %v328
        %330 = vmatmul.f32.gmra.mxu0 %v268
        %v331 = vpop.f32.mrf.mxu0
        %v332 = vadd.f32 %v297, %v331
        %333 = vmatmul.f32.gmra.mxu0 %v269
        %v334 = vpop.f32.mrf.mxu0
        %v335 = vadd.f32 %v297, %v334
        %336 = vmatmul.f32.gmra.mxu0 %v270
        %v337 = vpop.f32.mrf.mxu0
        %v338 = vadd.f32 %v297, %v337
        %339 = vmatmul.f32.gmra.mxu0 %v271
        %v340 = vpop.f32.mrf.mxu0
        %v341 = vadd.f32 %v297, %v340
        %342 = vmatmul.f32.gmra.mxu0 %v272
        %v343 = vpop.f32.mrf.mxu0
        %v344 = vadd.f32 %v297, %v343
        %345 = vmatmul.f32.gmra.mxu0 %v273
        %v346 = vpop.f32.mrf.mxu0
        %v347 = vadd.f32 %v297, %v346
        %348 = vmatmul.f32.gmra.mxu0 %v274
        %v349 = vpop.f32.mrf.mxu0
        %v350 = vadd.f32 %v297, %v349
        %351 = vmatmul.f32.gmra.mxu0 %v275
        %v352 = vpop.f32.mrf.mxu0
        %v353 = vadd.f32 %v297, %v352
        %354 = vmatmul.f32.gmra.mxu0 %v276
        %v355 = vpop.f32.mrf.mxu0
        %v356 = vadd.f32 %v297, %v355
        %357 = vmatmul.f32.gmra.mxu0 %v277
        %v358 = vpop.f32.mrf.mxu0
        %v359 = vadd.f32 %v297, %v358
        %360 = vmatmul.f32.gmra.mxu0 %v278
        %v361 = vpop.f32.mrf.mxu0
        %v362 = vadd.f32 %v297, %v361
        %363 = vdwg.mxu0
        %v364 = vmax.f32 %v317, 0.0
        %v365 = vmax.f32 %v320, 0.0
        %v366 = vmax.f32 %v323, 0.0
        %v367 = vmax.f32 %v326, 0.0
        %v368 = vmax.f32 %v329, 0.0
        %v369 = vmax.f32 %v332, 0.0
        %v370 = vmax.f32 %v335, 0.0
        %v371 = vmax.f32 %v338, 0.0
        %v372 = vmax.f32 %v341, 0.0
        %v373 = vmax.f32 %v344, 0.0
        %v374 = vmax.f32 %v347, 0.0
        %v375 = vmax.f32 %v350, 0.0
        %v376 = vmax.f32 %v353, 0.0
        %v377 = vmax.f32 %v356, 0.0
        %v378 = vmax.f32 %v359, 0.0
        %v379 = vmax.f32 %v362, 0.0
        %v380 = vld [vmem:[%s3] sm:$0x1]
        %s381 = sld [smem:[#allocation2]]
        %v382 = vstv %s381
        %383 = vmatpush.xpose.msra.mxu0 %v379
        %384 = vmatpush.xpose.msra.mxu0 %v378
        %385 = vmatpush.xpose.msra.mxu0 %v377
        %386 = vmatpush.xpose.msra.mxu0 %v376
        %387 = vmatpush.xpose.msra.mxu0 %v375
        %388 = vmatpush.xpose.msra.mxu0 %v374
        %389 = vmatpush.xpose.msra.mxu0 %v373
        %390 = vmatpush.xpose.msra.mxu0 %v372
        %391 = vmatpush.xpose.msra.mxu0 %v371
        %392 = vmatpush.xpose.msra.mxu0 %v370
        %393 = vmatpush.xpose.msra.mxu0 %v369
        %394 = vmatpush.xpose.msra.mxu0 %v368
        %395 = vmatpush.xpose.msra.mxu0 %v367
        %396 = vmatpush.xpose.msra.mxu0 %v366
        %397 = vmatpush.xpose.msra.mxu0 %v365
        %398 = vmatpush.xpose.msra.mxu0 %v364
        %399 = vmatmul.f32.gmra.mxu0 %v380
        %v400 = vpop.f32.mrf.mxu0
        %v401 = vadd.f32 %v382, %v400
        %402 = vdwg.mxu0
        %v403 = vmax.f32 %v401, 0.0
        %v404 = vsub.f32 0.0, %v403
        %v405 = vmul.f32 %v404, 1.442695
        %v406 = vpow.pop %v405
        %v407 = vadd.f32 %v406, 1.0
        %v408 = vrcp.pop %v407
        %v409 = vmul.f32 %v407, %v408
        %v410 = vsub.f32 1.0, %v409
        %v411 = vmul.f32 %v408, %v410
        %v412 = vadd.f32 %v408, %v411
        %vm413 = vweird.f32 %v407
        %vm414 = vweird.f32 %v408
        %vm415 = vmor %vm413, %vm414
        %v416 = vsel %vm415, %v408, %v412
        %v417 = vand.u32 2147483647, %v407
        %vm418 = vcmp.eq.f32.partialorder %v417, 8.507059e+37
        %v419 = vand.u32 %v407, 2147483648
        %v420 = vor.u32 1.1754944e-38, %v419
        %v421 = vsel %vm418, %v420, %v416
        %422 = vst [vmem:[%s261] sm:$0x1] %v421
        %s423 = sand.u32 %s142, 1
        %s424 = scalar_lea.sflag [#allocation5], %s423
        %s425 = sand.u32 %s142, 1
        %s426 = scalar_lea.vmem [#allocation8], %s425
        // Predicated region
        $region49: #{tpu_custom_call.1} parent=39 // pred_check
          %p427 = pneg %p152
        $region50: #{tpu_custom_call.1} parent=39 // pred_check_branch
          %429 = sbr.rel (%p427) target = $region52
        $region51: #{tpu_custom_call.1} parent=39 // pred_region
          %431 = vsyncadd %s424, 0
          %s432 = scalar_lea.hbm %s5, %s24
          %s434 = sshll.u32 %s426, 4
          %s435 = int_to_ptr.vmem [resolvable:$true] %s434
          %s436 = sshll.u32 %s432, 4
          %s437 = int_to_ptr.hbm [resolvable:$true] %s436
          %439 = dma.vmem_to_hbm [thread:$0]  %s435, 16, %s437, %s424
        $region52: #{tpu_custom_call.1} parent=39 // pred_fallthru
          _
      $region40: #{tpu_custom_call.1} parent=5 // pred_fallthru
        _
      %p440 = scmp.le.s32.totalorder 2, %s19
      // Predicated region
      $region53: #{tpu_custom_call.1} parent=5 // pred_check
        %p441 = pneg %p440
      $region54: #{tpu_custom_call.1} parent=5 // pred_check_branch
        %443 = sbr.rel (%p441) target = $region56
      $region55: #{tpu_custom_call.1} parent=5 // pred_region
        %s444 = ssub.s32 %s19, 2
        // Predicated region
        $region57: #{tpu_custom_call.1} parent=55 // pred_check
          %p445 = pneg %p158
        $region58: #{tpu_custom_call.1} parent=55 // pred_check_branch
          %447 = sbr.rel (%p445) target = $region60
        $region59: #{tpu_custom_call.1} parent=55 // pred_region
          %s448 = sand.u32 %s143, 1
          %s449 = scalar_lea.sflag [#allocation5], %s448
          %s450 = sand.u32 %s143, 1
          %s451 = scalar_lea.vmem [#allocation8], %s450
          %453 = dma.done %s449, 16
        $region60: #{tpu_custom_call.1} parent=55 // pred_fallthru
          _
      $region56: #{tpu_custom_call.1} parent=5 // pred_fallthru
        _
    $region6: #{tpu_custom_call.1} parent=1 // loop_footer
      %s23 = sadd.s32 1, %s19
    $region7: #{tpu_custom_call.1} parent=1 // loop_footer_branch
      %18 = sbr.rel target = $region3
    $region8: #{tpu_custom_call.1} parent=1 // loop_exit
      _
    %454 = vsyncpa [#allocation4], 1
    %s455 = scalar_lea.sflag [#allocation4], 1
    %456 = vsyncpa %s455, 1
    %457 = vsyncpa [#allocation7], 1
    %458 = vsyncpa [#allocation5], 1
    %s459 = scalar_lea.sflag [#allocation5], 1
    %460 = vsyncpa %s459, 1

</llo_original>
